<compile_context>
chip_gen: v7x
topology: tpu7x:2x2x1
jax: 0.10.0
libtpu: 0.0.40
codegen_flags: <defaults>
</compile_context>

<pallas_src>
import jax
import jax.numpy as jnp
from jax.experimental import pallas as pl
from jax.experimental.pallas import tpu as pltpu


def _ga_to_3d_kernel(x_ref, w_ref, b_ref, o_ref):
    # x_ref: (Bb, C_tot, TS)  producer dtype (e.g. f32) -- cast in-kernel
    # w_ref: (O, C_tot)       bf16 (resident across the grid)
    # b_ref: (O, 1)           f32  (resident across the grid)
    # o_ref: (Bb, O, TS)      out_dtype; spatial axis last -> lane-dense stores
    w = w_ref[...]
    b = b_ref[...]
    for bi in range(x_ref.shape[0]):                 # static, Bb is small
        acc = jnp.dot(w, x_ref[bi].astype(w.dtype),  # bf16 x bf16 -> f32 (MXU)
                      preferred_element_type=jnp.float32)
        o_ref[bi] = (acc + b).astype(o_ref.dtype)    # f32 epilogue, cast at store


def convert_ga_to_3d(x, weight, bias, in_channels, basis_dim,
                     *, compute_dtype=jnp.bfloat16, out_dtype=jnp.bfloat16):
    """Forward pass of ConvertGATo3d.

    x:      (B, in_channels, basis_dim, D, H, W)   (any float dtype; cast to
                                                    bf16 per-tile in-kernel)
    weight: (out_channels, in_channels*basis_dim, 1, 1, 1)  (pointwise conv)
    bias:   (out_channels,)
    returns (B, out_channels, D, H, W) in `out_dtype`
    """
    B, C_in, bd, D, H, W = x.shape
    assert C_in == in_channels and bd == basis_dim
    C_tot = in_channels * basis_dim
    O = weight.shape[0]
    assert weight.shape[1] == C_tot
    assert all(k == 1 for k in weight.shape[2:]), "pointwise (1x1x1) conv only"
    S = D * H * W

    x_bytes = jnp.dtype(x.dtype).itemsize
    out_bytes = jnp.dtype(out_dtype).itemsize
    w_itemsize = jnp.dtype(compute_dtype).itemsize

    # ---- Generation-aware VMEM budget ------------------------------------
    try:
        vmem_cap = int(pltpu.get_tpu_info().vmem_capacity_bytes)
    except Exception:
        vmem_cap = 64 << 20          # conservative fallback (v7x per-TC VMEM)
    # ~24 MiB of pipeline payload on v7x (64 MiB VMEM), ~48 MiB on v5e/v6e.
    budget = min(max(vmem_cap // 2 - (8 << 20), 8 << 20), 48 << 20)
    w_buf_bytes = 2 * (O * C_tot * w_itemsize + O * 4)   # resident weight+bias

    # ---- Spatial tile: biggest multiple of 128 that double-buffers --------
    per_lane = 2 * (C_tot * x_bytes + O * out_bytes)     # 2x in + 2x out bufs
    ts_budget = max(128, ((budget - w_buf_bytes) // per_lane) // 128 * 128)
    S_pad = pl.cdiv(S, 128) * 128
    TS = min(ts_budget, S_pad)
    n_s = pl.cdiv(S, TS)
    # Edge tiles (S % TS != 0): OOB lanes are inert (op is pointwise along S)
    # and the store is masked.

    # ---- Megacore balance (v7x: 2 TCs): keep >=4 steps when cheap ---------
    min_step_bytes = 512 * 1024
    if B * n_s < 4 and S > 128:
        ts_cand = max(128, pl.cdiv(pl.cdiv(S, pl.cdiv(4, B)), 128) * 128)
        if ts_cand < TS and ts_cand * (C_tot * x_bytes + O * out_bytes) >= min_step_bytes:
            TS = ts_cand
            n_s = pl.cdiv(S, TS)

    # ---- Tiny spatial volumes: amortize step overhead over batch rows -----
    Bb = 1
    if n_s == 1 and B > 1:
        per_batch = 2 * TS * (C_tot * x_bytes + O * out_bytes)
        max_bb = int(max(1, min(8, (budget - w_buf_bytes) // per_batch)))
        min_steps = 2 if B >= 4 else 1          # keep >=2 steps for megacore
        for cand in range(min(B, max_bb), 0, -1):
            if B % cand == 0 and B // cand >= min_steps:
                Bb = cand
                break

    # ---- Free reshapes (no transpose, no HBM shuffle) ----------------------
    x3 = x.reshape(B, C_tot, S)                         # blades fold into channels
    w2 = weight.reshape(O, C_tot).astype(compute_dtype)  # tiny; wrapper cast is fine
    b2 = bias.astype(jnp.float32).reshape(O, 1)

    # Single-buffer the resident weight/bias when they are non-trivial so the
    # spare reservation goes to a larger TS (mostly a v7x concern).
    w_spec_kw = {}
    if O * C_tot * w_itemsize >= (128 << 10):
        w_spec_kw = dict(pipeline_mode=pl.Buffered(1))

    footprint = 2 * Bb * TS * (C_tot * x_bytes + O * out_bytes) + w_buf_bytes
    vmem_limit = int(min(vmem_cap, max(footprint + (8 << 20), 32 << 20)))

    cost = pl.CostEstimate(
        flops=2 * B * O * C_tot * S,
        transcendentals=0,
        bytes_accessed=(B * C_tot * S * x_bytes + O * C_tot * w_itemsize
                        + O * 4 + B * O * S * out_bytes),
    )

    out = pl.pallas_call(
        _ga_to_3d_kernel,
        out_shape=jax.ShapeDtypeStruct((B, O, S), out_dtype),
        grid_spec=pltpu.PrefetchScalarGridSpec(
            num_scalar_prefetch=0,
            grid=(B // Bb, n_s),
            in_specs=[
                pl.BlockSpec((Bb, C_tot, TS), lambda b, s: (b, 0, s)),
                pl.BlockSpec((O, C_tot), lambda b, s: (0, 0), **w_spec_kw),
                pl.BlockSpec((O, 1), lambda b, s: (0, 0), **w_spec_kw),
            ],
            out_specs=pl.BlockSpec((Bb, O, TS), lambda b, s: (b, 0, s)),
        ),
        compiler_params=pltpu.CompilerParams(
            dimension_semantics=("parallel", "parallel"),
            vmem_limit_bytes=vmem_limit),
        cost_estimate=cost,
    )(x3, w2, b2)

    return out.reshape(B, O, D, H, W)


if __name__ == "__main__":
    # Small shapes consistent with the module: 3-D GA -> basis_dim = 2**3 = 8.
    B, in_channels, basis_dim = 2, 4, 8
    out_channels = 8
    D, H, W = 4, 8, 8                      # spatial volume S = 256
    C_tot = in_channels * basis_dim        # 32

    key = jax.random.PRNGKey(0)
    kx, kw, kb = jax.random.split(key, 3)

    x = jax.random.normal(kx, (B, in_channels, basis_dim, D, H, W),
                          dtype=jnp.float32)
    fan_in = C_tot                          # 1x1x1 kernel
    bound = 1.0 / (fan_in ** 0.5)
    weight = jax.random.uniform(kw, (out_channels, C_tot, 1, 1, 1),
                                minval=-bound, maxval=bound, dtype=jnp.float32)
    bias = jax.random.uniform(kb, (out_channels,),
                              minval=-bound, maxval=bound, dtype=jnp.float32)

    out = convert_ga_to_3d(x, weight, bias, in_channels, basis_dim)
    out = jax.block_until_ready(out)
    assert out.shape == (B, out_channels, D, H, W), out.shape
    out_f32 = out.astype(jnp.float32)

    S = D * H * W
    # Tight check: same bf16-rounded inputs, f32 math, bf16-rounded output
    # (isolates the kernel's arithmetic from the deliberate dtype choices).
    x_q = x.reshape(B, C_tot, S).astype(jnp.bfloat16).astype(jnp.float32)
    w_q = weight.reshape(out_channels, C_tot).astype(jnp.bfloat16).astype(jnp.float32)
    ref_q = jnp.einsum("oc,bcs->bos", w_q, x_q,
                       precision=jax.lax.Precision.HIGHEST) + bias[None, :, None]
    ref_q = ref_q.astype(out.dtype).astype(jnp.float32)
    ref_q = ref_q.reshape(B, out_channels, D, H, W)
    assert jnp.allclose(out_f32, ref_q, atol=2e-2, rtol=2e-2), \
        float(jnp.max(jnp.abs(out_f32 - ref_q)))

    # Loose check vs the module's f32 semantics (view + pointwise conv ==
    # per-voxel channel matmul); tolerance covers the bf16 compute/output.
    ref = jnp.einsum("oc,bcs->bos",
                     weight.reshape(out_channels, C_tot),
                     x.reshape(B, C_tot, S),
                     precision=jax.lax.Precision.HIGHEST) + bias[None, :, None]
    ref = ref.reshape(B, out_channels, D, H, W)
    assert jnp.allclose(out_f32, ref, atol=6e-2, rtol=6e-2), \
        float(jnp.max(jnp.abs(out_f32 - ref)))

    print("KERNEL_OK")
</pallas_src>

<mosaic_0001>
module attributes {stable_mosaic.version = 11 : i64} {
  func.func @_ga_to_3d_kernel(%arg0: i32, %arg1: i32, %arg2: memref<2x32x256xf32, #tpu.memory_space<vmem>>, %arg3: memref<8x32xbf16, #tpu.memory_space<vmem>>, %arg4: memref<8x1xf32, #tpu.memory_space<vmem>>, %arg5: memref<2x8x256xbf16, #tpu.memory_space<vmem>>) attributes {dimension_semantics = [#tpu.dimension_semantics<parallel>, #tpu.dimension_semantics<parallel>], iteration_bounds = array<i64: 1, 1>, scalar_prefetch = 0 : i64, scratch_operands = 0 : i64, tpu.core_type = #tpu.core_type<tc>, window_params = [{transform_indices = @transform_0, window_bounds = array<i64: 2, 32, 256>}, {pipeline_mode = #tpu.pipeline_mode<synchronous>, transform_indices = @transform_1, window_bounds = array<i64: 8, 32>}, {pipeline_mode = #tpu.pipeline_mode<synchronous>, transform_indices = @transform_2, window_bounds = array<i64: 8, 1>}, {transform_indices = @transform_3, window_bounds = array<i64: 2, 8, 256>}]} {
    %c0 = arith.constant 0 : index
    %c0_0 = arith.constant 0 : index
    %0 = vector.load %arg3[%c0, %c0_0] : memref<8x32xbf16, #tpu.memory_space<vmem>>, vector<8x32xbf16>
    %c0_1 = arith.constant 0 : index
    %c0_2 = arith.constant 0 : index
    %1 = vector.load %arg4[%c0_1, %c0_2] : memref<8x1xf32, #tpu.memory_space<vmem>>, vector<8x1xf32>
    %c0_3 = arith.constant 0 : index
    %c0_4 = arith.constant 0 : index
    %c0_5 = arith.constant 0 : index
    %2 = vector.load %arg2[%c0_3, %c0_4, %c0_5] : memref<2x32x256xf32, #tpu.memory_space<vmem>>, vector<1x32x256xf32>
    %3 = vector.shape_cast %2 : vector<1x32x256xf32> to vector<32x256xf32>
    %4 = arith.truncf %3 : vector<32x256xf32> to vector<32x256xbf16>
    %cst = arith.constant dense<0.000000e+00> : vector<8x256xf32>
    %5 = tpu.matmul %0, %4, %cst {dimension_numbers = #tpu.dot_dimension_numbers<[1], [0], [0], [1], [0, 0, 1, 1], [], []>} : vector<8x32xbf16>, vector<32x256xbf16>, vector<8x256xf32> -> vector<8x256xf32>
    %6 = vector.broadcast %1 : vector<8x1xf32> to vector<8x256xf32>
    %7 = arith.addf %5, %6 : vector<8x256xf32>
    %8 = arith.truncf %7 : vector<8x256xf32> to vector<8x256xbf16>
    %c0_6 = arith.constant 0 : index
    %c0_7 = arith.constant 0 : index
    %c0_8 = arith.constant 0 : index
    %9 = vector.load %arg5[%c0_6, %c0_7, %c0_8] : memref<2x8x256xbf16, #tpu.memory_space<vmem>>, vector<1x8x256xbf16>
    %10 = vector.shape_cast %9 : vector<1x8x256xbf16> to vector<8x256xbf16>
    %11 = vector.shape_cast %8 : vector<8x256xbf16> to vector<1x8x256xbf16>
    tpu.vector_store %arg5[%c0_6, %c0_7, %c0_8], %11 {strides = array<i32>} : memref<2x8x256xbf16, #tpu.memory_space<vmem>>, vector<1x8x256xbf16>,
    %c1 = arith.constant 1 : index
    %c0_9 = arith.constant 0 : index
    %c0_10 = arith.constant 0 : index
    %12 = vector.load %arg2[%c1, %c0_9, %c0_10] : memref<2x32x256xf32, #tpu.memory_space<vmem>>, vector<1x32x256xf32>
    %13 = vector.shape_cast %12 : vector<1x32x256xf32> to vector<32x256xf32>
    %14 = arith.truncf %13 : vector<32x256xf32> to vector<32x256xbf16>
    %cst_11 = arith.constant dense<0.000000e+00> : vector<8x256xf32>
    %15 = tpu.matmul %0, %14, %cst_11 {dimension_numbers = #tpu.dot_dimension_numbers<[1], [0], [0], [1], [0, 0, 1, 1], [], []>} : vector<8x32xbf16>, vector<32x256xbf16>, vector<8x256xf32> -> vector<8x256xf32>
    %16 = vector.broadcast %1 : vector<8x1xf32> to vector<8x256xf32>
    %17 = arith.addf %15, %16 : vector<8x256xf32>
    %18 = arith.truncf %17 : vector<8x256xf32> to vector<8x256xbf16>
    %c1_12 = arith.constant 1 : index
    %c0_13 = arith.constant 0 : index
    %c0_14 = arith.constant 0 : index
    %19 = vector.load %arg5[%c1_12, %c0_13, %c0_14] : memref<2x8x256xbf16, #tpu.memory_space<vmem>>, vector<1x8x256xbf16>
    %20 = vector.shape_cast %19 : vector<1x8x256xbf16> to vector<8x256xbf16>
    %21 = vector.shape_cast %18 : vector<8x256xbf16> to vector<1x8x256xbf16>
    tpu.vector_store %arg5[%c1_12, %c0_13, %c0_14], %21 {strides = array<i32>} : memref<2x8x256xbf16, #tpu.memory_space<vmem>>, vector<1x8x256xbf16>,
    return
  }
  func.func @transform_0(%arg0: i32, %arg1: i32) -> (i32, i32, i32) {
    %c0_i32 = arith.constant 0 : i32
    %c0_i32_0 = arith.constant 0 : i32
    return %arg0, %c0_i32, %arg1 : i32, i32, i32
  }
  func.func @transform_1(%arg0: i32, %arg1: i32) -> (i32, i32) {
    %c0_i32 = arith.constant 0 : i32
    %c0_i32_0 = arith.constant 0 : i32
    %c0_i32_1 = arith.constant 0 : i32
    return %c0_i32, %c0_i32_0 : i32, i32
  }
  func.func @transform_2(%arg0: i32, %arg1: i32) -> (i32, i32) {
    %c0_i32 = arith.constant 0 : i32
    %c0_i32_0 = arith.constant 0 : i32
    %c0_i32_1 = arith.constant 0 : i32
    return %c0_i32, %c0_i32_0 : i32, i32
  }
  func.func @transform_3(%arg0: i32, %arg1: i32) -> (i32, i32, i32) {
    %c0_i32 = arith.constant 0 : i32
    %c0_i32_0 = arith.constant 0 : i32
    return %arg0, %c0_i32, %arg1 : i32, i32, i32
  }
}

</mosaic_0001>

<llo_original>
// kernel: tpu_custom_call.1
$region0: #{tpu_custom_call.1}
  #allocation0 [shape = 'u32[]', space=smem, size = 0x4, offset = 0x4, fixed_abs, tag = 'smem constant byte address 0x4 - core index']
  #allocation1 [shape = 'u32[144,128]{1,0:T(1,128)}', space=vmem, size = 0x12000, scoped, tag = 'internal scratch']
  %s0 = inlined_call_operand.hbm [shape: f32[2,32,256], index: 0, kind: input, shape index: {}]
  %s1 = inlined_call_operand.vmem [shape: bf16[8,32], index: 1, kind: input, shape index: {}]
  %s2 = inlined_call_operand.vmem [shape: f32[8,1], index: 2, kind: input, shape index: {}]
  %s3 = inlined_call_operand.hbm [shape: bf16[2,8,256], index: 3, kind: output, shape index: {}]
  %s4 = sld [smem:[#allocation0]]
  $region26: #{tpu_custom_call.1} parent=0
    _
  %s6 = ssub.s32 1, %s4
  %s7 = scalar_select 0, %s6, %s4
  $region1: #{tpu_custom_call.1} parent=0
    #allocation2 [shape = 'u8[65536]{0}', space=vmem, size = 0x10000, scoped, tag = 'input window, operand 0, single buffered']
    #allocation3 [shape = 's32[1]{0}', space=sflag, size = 0x4, scoped, tag = 'scoped memory for tpu_custom_call.1']
    #allocation4 [shape = 's32[1]{0}', space=sflag, size = 0x4, scoped, tag = 'scoped memory for tpu_custom_call.1']
    #allocation5 [shape = 'u8[8192]{0}', space=vmem, size = 0x2000, scoped, tag = 'output window, operand 0, single buffered']
    %8 = vsyncpa [#allocation3], 0
    %9 = vsyncpa [#allocation4], 0
    // Predicated region
    $region2: #{tpu_custom_call.1} parent=1 // pred_check
      _
    $region3: #{tpu_custom_call.1} parent=1 // pred_check_branch
      %11 = sbr.rel (0) target = $region5
    $region4: #{tpu_custom_call.1} parent=1 // pred_region
      %s13 = ssub.s32 2048, 2048
      %14 = vsyncadd [#allocation3], %s13
      %s15 = sshll.u32 [#allocation2], 4
      %s16 = int_to_ptr.vmem [resolvable:$true] %s15
      %21 = dma.hbm_to_vmem [thread:$0]  %s0, 2048, %s16, [#allocation3], 256, 256, 16
    $region5: #{tpu_custom_call.1} parent=1 // pred_fallthru
      _
    // Predicated region
    $region6: #{tpu_custom_call.1} parent=1 // pred_check
      _
    $region7: #{tpu_custom_call.1} parent=1 // pred_check_branch
      %23 = sbr.rel (0) target = $region9
    $region8: #{tpu_custom_call.1} parent=1 // pred_region
      _
    $region9: #{tpu_custom_call.1} parent=1 // pred_fallthru
      _
    // Predicated region
    $region10: #{tpu_custom_call.1} parent=1 // pred_check
      _
    $region11: #{tpu_custom_call.1} parent=1 // pred_check_branch
      %25 = sbr.rel (0) target = $region13
    $region12: #{tpu_custom_call.1} parent=1 // pred_region
      _
    $region13: #{tpu_custom_call.1} parent=1 // pred_fallthru
      _
    // Predicated region
    $region14: #{tpu_custom_call.1} parent=1 // pred_check
      _
    $region15: #{tpu_custom_call.1} parent=1 // pred_check_branch
      %27 = sbr.rel (0) target = $region17
    $region16: #{tpu_custom_call.1} parent=1 // pred_region
      %28 = dma.done [#allocation3], 2048
    $region17: #{tpu_custom_call.1} parent=1 // pred_fallthru
      _
    %v30 = vld [vmem:[%s1] sm:$0xf]
    %v31 = vld [vmem:[%s2] sm:$0xff]
    %v32 = vld [vmem:[#allocation2] sm:$0xff]
    %v33 = vld [vmem:[#allocation2 + $0x8] sm:$0xff]
    %v34 = vld [vmem:[#allocation2 + $0x10] sm:$0xff]
    %v35 = vld [vmem:[#allocation2 + $0x18] sm:$0xff]
    %v36 = vld [vmem:[#allocation2 + $0x20] sm:$0xff]
    %v37 = vld [vmem:[#allocation2 + $0x28] sm:$0xff]
    %v38 = vld [vmem:[#allocation2 + $0x30] sm:$0xff]
    %v39 = vld [vmem:[#allocation2 + $0x38] sm:$0xff]
    %v40 = vpack.c.bf16 %v34, %v32
    %v41 = vpack.c.bf16 %v35, %v33
    %v42 = vpack.c.bf16 %v38, %v36
    %v43 = vpack.c.bf16 %v39, %v37
    %45 = vset.pattern.permute.xlu0 0
    %46 = vperm.xlu0 %45, %v31
    %v47 = vpop.permute.xlu0 %46
    %vm49 = vcmask 261120
    %v51 = vsel %vm49, %v30, 0
    %53 = vmatprep.subr.bf16.mxu0 %v41
    %54 = vmatpush1.bf16.msra.mxu0 %v40
    %55 = vmatprep.subr.bf16.mxu0 %v43
    %56 = vmatpush1.bf16.msra.mxu0 %v42
    %57 = vmatprep.subr.bf16.mxu0 0
    %58 = vmatpush1.bf16.msra.mxu0 0
    %59 = vmatprep.subr.bf16.mxu0 0
    %60 = vmatpush1.bf16.msra.mxu0 0
    %61 = vmatprep.subr.bf16.mxu0 0
    %62 = vmatpush1.bf16.msra.mxu0 0
    %63 = vmatprep.subr.bf16.mxu0 0
    %64 = vmatpush1.bf16.msra.mxu0 0
    %65 = vmatprep.subr.bf16.mxu0 0
    %66 = vmatpush1.bf16.msra.mxu0 0
    %67 = vmatprep.subr.bf16.mxu0 0
    %68 = vmatpush1.bf16.msra.mxu0 0
    %69 = vmatprep.subr.bf16.mxu0 0
    %70 = vmatpush1.bf16.msra.mxu0 0
    %71 = vmatprep.subr.bf16.mxu0 0
    %72 = vmatpush1.bf16.msra.mxu0 0
    %73 = vmatprep.subr.bf16.mxu0 0
    %74 = vmatpush1.bf16.msra.mxu0 0
    %75 = vmatprep.subr.bf16.mxu0 0
    %76 = vmatpush1.bf16.msra.mxu0 0
    %77 = vmatprep.subr.bf16.mxu0 0
    %78 = vmatpush1.bf16.msra.mxu0 0
    %79 = vmatprep.subr.bf16.mxu0 0
    %80 = vmatpush1.bf16.msra.mxu0 0
    %81 = vmatprep.subr.bf16.mxu0 0
    %82 = vmatpush1.bf16.msra.mxu0 0
    %83 = vmatprep.subr.bf16.mxu0 0
    %84 = vmatpush1.bf16.msra.mxu0 0
    %85 = vmatprep.mubr.bf16.mxu0 0
    %86 = vmatmul.mubr.bf16.gmra.mrb[0].mxu0 %v51
    %v87 = vpop.f32.mrb[0].mxu0
    %v88 = vadd.f32 %v47, %v87
    %v89 = vpop.f32.mrb[0].mxu0
    %v90 = vadd.f32 %v47, %v89
    %v91 = vpop.f32.mrb[0].mxu0
    %v92 = vpop.f32.mrb[0].mxu0
    %93 = vdwg.mxu0
    %v94 = vpack.c.bf16 %v88, %v88
    %v95 = vpack.c.bf16 %v90, %v90
    %v98 = vunpack.c.l.b16 %v94
    %v99 = vunpack.c.l.b16 %v95
    %v100 = vpack.c.b16 %v99, %v98
    %102 = vst [vmem:[#allocation5] sm:$0xff] %v100
    %s103 = scalar_lea.vmem [#allocation2], 64
    %v104 = vld [vmem:[%s103] sm:$0xff]
    %v105 = vld [vmem:[%s103 + $0x8] sm:$0xff]
    %v106 = vld [vmem:[%s103 + $0x10] sm:$0xff]
    %v107 = vld [vmem:[%s103 + $0x18] sm:$0xff]
    %v108 = vld [vmem:[%s103 + $0x20] sm:$0xff]
    %v109 = vld [vmem:[%s103 + $0x28] sm:$0xff]
    %v110 = vld [vmem:[%s103 + $0x30] sm:$0xff]
    %v111 = vld [vmem:[%s103 + $0x38] sm:$0xff]
    %v112 = vpack.c.bf16 %v106, %v104
    %v113 = vpack.c.bf16 %v107, %v105
    %v114 = vpack.c.bf16 %v110, %v108
    %v115 = vpack.c.bf16 %v111, %v109
    %116 = vmatprep.subr.bf16.mxu0 %v113
    %117 = vmatpush1.bf16.msra.mxu0 %v112
    %118 = vmatprep.subr.bf16.mxu0 %v115
    %119 = vmatpush1.bf16.msra.mxu0 %v114
    %120 = vmatprep.subr.bf16.mxu0 0
    %121 = vmatpush1.bf16.msra.mxu0 0
    %122 = vmatprep.subr.bf16.mxu0 0
    %123 = vmatpush1.bf16.msra.mxu0 0
    %124 = vmatprep.subr.bf16.mxu0 0
    %125 = vmatpush1.bf16.msra.mxu0 0
    %126 = vmatprep.subr.bf16.mxu0 0
    %127 = vmatpush1.bf16.msra.mxu0 0
    %128 = vmatprep.subr.bf16.mxu0 0
    %129 = vmatpush1.bf16.msra.mxu0 0
    %130 = vmatprep.subr.bf16.mxu0 0
    %131 = vmatpush1.bf16.msra.mxu0 0
    %132 = vmatprep.subr.bf16.mxu0 0
    %133 = vmatpush1.bf16.msra.mxu0 0
    %134 = vmatprep.subr.bf16.mxu0 0
    %135 = vmatpush1.bf16.msra.mxu0 0
    %136 = vmatprep.subr.bf16.mxu0 0
    %137 = vmatpush1.bf16.msra.mxu0 0
    %138 = vmatprep.subr.bf16.mxu0 0
    %139 = vmatpush1.bf16.msra.mxu0 0
    %140 = vmatprep.subr.bf16.mxu0 0
    %141 = vmatpush1.bf16.msra.mxu0 0
    %142 = vmatprep.subr.bf16.mxu0 0
    %143 = vmatpush1.bf16.msra.mxu0 0
    %144 = vmatprep.subr.bf16.mxu0 0
    %145 = vmatpush1.bf16.msra.mxu0 0
    %146 = vmatprep.subr.bf16.mxu0 0
    %147 = vmatpush1.bf16.msra.mxu0 0
    %148 = vmatprep.mubr.bf16.mxu0 0
    %149 = vmatmul.mubr.bf16.gmra.mrb[0].mxu0 %v51
    %v150 = vpop.f32.mrb[0].mxu0
    %v151 = vadd.f32 %v47, %v150
    %v152 = vpop.f32.mrb[0].mxu0
    %v153 = vadd.f32 %v47, %v152
    %v154 = vpop.f32.mrb[0].mxu0
    %v155 = vpop.f32.mrb[0].mxu0
    %156 = vdwg.mxu0
    %v157 = vpack.c.bf16 %v151, %v151
    %v158 = vpack.c.bf16 %v153, %v153
    %v161 = vunpack.c.l.b16 %v157
    %v162 = vunpack.c.l.b16 %v158
    %v163 = vpack.c.b16 %v162, %v161
    %s165 = scalar_lea.vmem [#allocation5], 8
    %166 = vst [vmem:[%s165] sm:$0xff] %v163
    // Predicated region
    $region18: #{tpu_custom_call.1} parent=1 // pred_check
      _
    $region19: #{tpu_custom_call.1} parent=1 // pred_check_branch
      %168 = sbr.rel (0) target = $region21
    $region20: #{tpu_custom_call.1} parent=1 // pred_region
      %s170 = ssub.s32 256, 256
      %171 = vsyncadd [#allocation4], %s170
      %s172 = sshll.u32 [#allocation5], 4
      %s173 = int_to_ptr.vmem [resolvable:$true] %s172
      %178 = dma.vmem_to_hbm [thread:$0]  %s173, 256, %s3, [#allocation4], 128, 128, 8
    $region21: #{tpu_custom_call.1} parent=1 // pred_fallthru
      _
    // Predicated region
    $region22: #{tpu_custom_call.1} parent=1 // pred_check
      _
    $region23: #{tpu_custom_call.1} parent=1 // pred_check_branch
      %180 = sbr.rel (0) target = $region25
    $region24: #{tpu_custom_call.1} parent=1 // pred_region
      %181 = dma.done [#allocation4], 256
    $region25: #{tpu_custom_call.1} parent=1 // pred_fallthru
      _
    %182 = vsyncpa [#allocation3], 1
    %183 = vsyncpa [#allocation4], 1

</llo_original>
